<compile_context>
chip_gen: v7x
topology: tpu7x:2x2x1
jax: 0.10.0
libtpu: 0.0.40
codegen_flags: <defaults>
</compile_context>

<pallas_src>
import functools

import jax
import jax.numpy as jnp
from jax import lax
from jax.experimental import pallas as pl
from jax.experimental.pallas import tpu as pltpu

LANE = 128
SUB = 128  # rows per in-kernel sub-slab


def _round_up(n, m):
    return ((n + m - 1) // m) * m


# ---------------------------------------------------------------------------
# Kernel
# ---------------------------------------------------------------------------
def autoencoder_kernel(x_ref, w1_ref, wslab_ref, bslab_ref, out_ref, *, n_sub, sub):
    """One grid step: runs the full network on `n_sub` row slabs of `sub` rows.

    wslab_ref: (9, D, D) bf16  [e_w2, e_w3, p_w1, p_w2, p_w3*, d_w1z*, d_w1k, d_w2, d_w3]
    bslab_ref: (9, D)    f32   [e_b1, e_b2, e_b3, p_b1, p_b2, p_b3*, d_b1, d_b2, d_b3]
    (*) pre-shifted so zhat lands in columns [Y, Y+Z); yhat lands in [0, Y).
    """
    bf16 = jnp.bfloat16

    def bias(j):
        return bslab_ref[pl.ds(j, 1), :]                      # (1, D) f32, static j

    def lin(h_bf, w, j):
        # bf16 x bf16 -> f32 accumulation on the MXU, f32 bias add on the VPU.
        return jnp.dot(h_bf, w, preferred_element_type=jnp.float32) + bias(j)

    def relu_bf(a_f32):
        # ReLU on the f32 accumulator (v5e VPU has no bf16 ALU), then downcast
        # to bf16 for the next MXU push.
        return jnp.maximum(a_f32, 0.0).astype(bf16)

    def sub_slab(s, carry):
        r0 = pl.multiple_of(s * sub, sub)
        xs = x_ref[pl.ds(r0, sub), :]                         # (sub, X_dim) bf16

        # ---- encoder: Linear -> ReLU -> Linear -> ReLU -> Dropout(id) -> Linear
        h = relu_bf(jnp.dot(xs, w1_ref[...],
                            preferred_element_type=jnp.float32) + bias(0))
        h = relu_bf(lin(h, wslab_ref[0], 1))                  # e_w2
        k = lin(h, wslab_ref[1], 2)                           # e_w3: latent in cols [:L], f32
        k_bf = k.astype(bf16)

        # ---- predictor: Linear -> ReLU -> Linear -> ReLU -> Dropout(id) -> Linear
        h = relu_bf(lin(k_bf, wslab_ref[2], 3))               # p_w1
        h = relu_bf(lin(h, wslab_ref[3], 4))                  # p_w2
        # p_w3/p_b3 pre-shifted: zhat in cols [Y, Y+Z), exact zeros elsewhere.
        zsh = lin(h, wslab_ref[4], 5)

        # ---- decoder on concat((zhat, k)):
        #   concat @ W1 == zhat_shifted @ W1_z_shifted + k @ W1_k   (pad rows are 0)
        h = (jnp.dot(zsh.astype(bf16), wslab_ref[5],
                     preferred_element_type=jnp.float32)
             + jnp.dot(k_bf, wslab_ref[6], preferred_element_type=jnp.float32)
             + bias(6))
        h = relu_bf(h)
        h = relu_bf(lin(h, wslab_ref[7], 7))                  # d_w2
        ysh = lin(h, wslab_ref[8], 8)                         # d_w3: yhat in cols [:Y), 0 elsewhere

        # Packed lane-dense output: yhat | zhat share one (sub, D) f32 store.
        out_ref[pl.ds(r0, sub), :] = (ysh + zsh).astype(out_ref.dtype)
        return carry

    lax.fori_loop(0, n_sub, sub_slab, 0, unroll=True)


# ---------------------------------------------------------------------------
# Parameter construction / preparation
# ---------------------------------------------------------------------------
def make_params(key, X_dim, Y_dim, Z_dim, hidden_dim, latent_dim):
    """Deterministic PyTorch-style uniform(-1/sqrt(fan_in), +) init, (in, out) layout."""
    def lin(key, fan_in, fan_out):
        kw, kb = jax.random.split(key)
        bound = 1.0 / jnp.sqrt(float(fan_in))
        w = jax.random.uniform(kw, (fan_in, fan_out), jnp.float32, -bound, bound)
        b = jax.random.uniform(kb, (1, fan_out), jnp.float32, -bound, bound)
        return w, b

    keys = jax.random.split(key, 11)
    p = {}
    p["e_w1"], p["e_b1"] = lin(keys[0], X_dim, hidden_dim)
    p["e_w2"], p["e_b2"] = lin(keys[1], hidden_dim, hidden_dim)
    p["e_w3"], p["e_b3"] = lin(keys[2], hidden_dim, latent_dim)
    p["p_w1"], p["p_b1"] = lin(keys[3], latent_dim, hidden_dim)
    p["p_w2"], p["p_b2"] = lin(keys[4], hidden_dim, hidden_dim)
    p["p_w3"], p["p_b3"] = lin(keys[5], hidden_dim, Z_dim)
    p["d_w1"], p["d_b1"] = lin(keys[6], Z_dim + latent_dim, hidden_dim)
    p["d_w2"], p["d_b2"] = lin(keys[7], hidden_dim, hidden_dim)
    p["d_w3"], p["d_b3"] = lin(keys[8], hidden_dim, Y_dim)
    p["r_w0"], _ = lin(keys[9], hidden_dim, hidden_dim)
    p["r_w1"], _ = lin(keys[10], latent_dim, latent_dim)
    return p


def prepare_kernel_params(params, Z_dim, Y_dim):
    """One-time weight prep: bf16 cast, common (D, D) zero-padded layout,
    yhat/zhat column-shift packing, and 3-array consolidation."""
    bf16 = jnp.bfloat16
    X_dim, hidden = params["e_w1"].shape
    latent = params["e_w3"].shape[1]
    D = _round_up(max(hidden, latent, Y_dim + Z_dim), LANE)
    assert Y_dim + Z_dim <= D, "yhat|zhat packing requires Y_dim + Z_dim <= D"

    def pad2(a):                                     # (r, c) -> (D, D), zero pad
        return jnp.pad(a, ((0, D - a.shape[0]), (0, D - a.shape[1])))

    def padb(b):                                     # (1, n) -> (D,), zero pad
        return jnp.pad(b[0], (0, D - b.shape[1]))

    # zhat is produced (and consumed) shifted to columns [Y, Y+Z) so the packed
    # output (yhat | zhat) is a plain add of two disjoint zero-padded slabs.
    p_w3_s = jnp.zeros((D, D), jnp.float32).at[:hidden, Y_dim:Y_dim + Z_dim].set(
        params["p_w3"])
    p_b3_s = jnp.zeros((D,), jnp.float32).at[Y_dim:Y_dim + Z_dim].set(
        params["p_b3"][0])
    d_w1z_s = jnp.zeros((D, D), jnp.float32).at[Y_dim:Y_dim + Z_dim, :hidden].set(
        params["d_w1"][:Z_dim, :])

    w_slab = jnp.stack([
        pad2(params["e_w2"]), pad2(params["e_w3"]),
        pad2(params["p_w1"]), pad2(params["p_w2"]), p_w3_s,
        d_w1z_s, pad2(params["d_w1"][Z_dim:, :]),
        pad2(params["d_w2"]), pad2(params["d_w3"]),
    ]).astype(bf16)                                   # (9, D, D) bf16

    b_slab = jnp.stack([
        padb(params["e_b1"]), padb(params["e_b2"]), padb(params["e_b3"]),
        padb(params["p_b1"]), padb(params["p_b2"]), p_b3_s,
        padb(params["d_b1"]), padb(params["d_b2"]), padb(params["d_b3"]),
    ])                                                # (9, D) f32

    return {
        "e_w1": jnp.pad(params["e_w1"], ((0, 0), (0, D - hidden))).astype(bf16),
        "w_slab": w_slab,
        "b_slab": b_slab,
        # Regularizer weights stay in plain JAX (f32); never DMA'd into VMEM.
        "r_w0": params["r_w0"],
        "r_w1": params["r_w1"],
    }


# ---------------------------------------------------------------------------
# Forward wrapper
# ---------------------------------------------------------------------------
@functools.partial(jax.jit, static_argnames=("Y_dim", "Z_dim", "l2_reg"))
def autoencoder_forward(x, kp, Y_dim, Z_dim, l2_reg=0.01):
    B, X_dim = x.shape
    D = kp["w_slab"].shape[-1]

    # Batch tiling: up to 4 sub-slabs of 128 rows per grid step; keep >= 2 grid
    # steps when B > 128 so v7x's two TensorCores both get work.  Tiny batches
    # round rows to a multiple of 16 (bf16 sublane packing on v5e).
    total_subs = pl.cdiv(B, SUB)
    if total_subs <= 1:
        sub = _round_up(B, 16)
        n_sub = 1
        TB = sub
        nb = 1
    else:
        n_sub = min(4, max(1, total_subs // 2))
        sub = SUB
        TB = n_sub * SUB
        nb = pl.cdiv(B, TB)
    Bp = nb * TB

    xb = x.astype(jnp.bfloat16)                       # feed x as bf16
    if Bp != B:
        xb = jnp.pad(xb, ((0, Bp - B), (0, 0)))

    kernel = functools.partial(autoencoder_kernel, n_sub=n_sub, sub=sub)

    in_specs = [
        pl.BlockSpec((TB, X_dim), lambda i: (i, 0)),                 # x tile
        pl.BlockSpec(kp["e_w1"].shape, lambda i: (0, 0)),            # resident
        pl.BlockSpec(kp["w_slab"].shape, lambda i: (0, 0, 0)),       # resident
        pl.BlockSpec(kp["b_slab"].shape, lambda i: (0, 0)),          # resident
    ]
    out_specs = pl.BlockSpec((TB, D), lambda i: (i, 0))
    out_shape = jax.ShapeDtypeStruct((Bp, D), jnp.float32)

    # Advisory cost estimate for XLA's scheduler.
    flops_per_row = 2 * (X_dim * D + 9 * D * D)
    weight_bytes = (kp["e_w1"].size * 2 + kp["w_slab"].size * 2
                    + kp["b_slab"].size * 4)
    cost = pl.CostEstimate(flops=Bp * flops_per_row, transcendentals=0,
                           bytes_accessed=weight_bytes + Bp * X_dim * 2 + Bp * D * 4)

    packed = pl.pallas_call(
        kernel,
        out_shape=out_shape,
        grid=(nb,),
        in_specs=in_specs,
        out_specs=out_specs,
        compiler_params=pltpu.CompilerParams(
            dimension_semantics=("parallel",)),       # batch axis -> both TCs on v7x
        cost_estimate=cost,
    )(xb, kp["e_w1"], kp["w_slab"], kp["b_slab"])

    # Weight-norm regularizer depends only on constant weights -> plain JAX,
    # outside the kernel (no per-call HBM->VMEM traffic, no in-kernel sqrt).
    reg = l2_reg * (jnp.linalg.norm(kp["r_w0"]) + jnp.linalg.norm(kp["r_w1"]))

    yhat = packed[:B, :Y_dim]
    zhat = packed[:B, Y_dim:Y_dim + Z_dim]
    return yhat, zhat, reg


# ---------------------------------------------------------------------------
# Pure-JAX reference (mirrors the kernel's bf16-weight / f32-accumulate math)
# ---------------------------------------------------------------------------
def reference_forward(x, params, l2_reg=0.01):
    bf = lambda a: a.astype(jnp.bfloat16)

    def lin(h, w, b):
        return jnp.dot(bf(h), bf(w), preferred_element_type=jnp.float32) + b

    h = jax.nn.relu(lin(x, params["e_w1"], params["e_b1"]))
    h = jax.nn.relu(lin(h, params["e_w2"], params["e_b2"]))
    k = lin(h, params["e_w3"], params["e_b3"])
    h = jax.nn.relu(lin(k, params["p_w1"], params["p_b1"]))
    h = jax.nn.relu(lin(h, params["p_w2"], params["p_b2"]))
    zhat = lin(h, params["p_w3"], params["p_b3"])
    concat = jnp.concatenate([zhat, k], axis=1)
    h = jax.nn.relu(lin(concat, params["d_w1"], params["d_b1"]))
    h = jax.nn.relu(lin(h, params["d_w2"], params["d_b2"]))
    yhat = lin(h, params["d_w3"], params["d_b3"])
    reg = l2_reg * (jnp.linalg.norm(params["r_w0"]) + jnp.linalg.norm(params["r_w1"]))
    return yhat, zhat, reg


if __name__ == "__main__":
    # Small shapes consistent with the module: x:(B, X_dim)
    B, X_dim, Y_dim, Z_dim = 8, 32, 16, 8
    hidden_dim, latent_dim = 128, 64
    l2_reg = 0.01

    key = jax.random.PRNGKey(0)
    k_x, k_x2, k_p = jax.random.split(key, 3)
    params = make_params(k_p, X_dim, Y_dim, Z_dim, hidden_dim, latent_dim)
    kparams = prepare_kernel_params(params, Z_dim, Y_dim)

    # --- small-batch path: single sub-slab, single grid step ---------------
    x = jax.random.normal(k_x, (B, X_dim), dtype=jnp.float32)
    yhat, zhat, reg = autoencoder_forward(x, kparams, Y_dim=Y_dim, Z_dim=Z_dim,
                                          l2_reg=l2_reg)
    jax.block_until_ready((yhat, zhat, reg))

    yhat_r, zhat_r, reg_r = reference_forward(x, params, l2_reg=l2_reg)
    assert yhat.shape == (B, Y_dim) and zhat.shape == (B, Z_dim)
    assert jnp.allclose(yhat, yhat_r, atol=2e-3, rtol=2e-3)
    assert jnp.allclose(zhat, zhat_r, atol=2e-3, rtol=2e-3)
    assert jnp.allclose(reg, reg_r, atol=1e-5, rtol=1e-5)

    # --- larger-batch path: exercises the in-kernel sub-slab loop (n_sub=2),
    #     a multi-step grid and batch-row padding ----------------------------
    B2 = 520
    x2 = jax.random.normal(k_x2, (B2, X_dim), dtype=jnp.float32)
    yhat2, zhat2, _ = autoencoder_forward(x2, kparams, Y_dim=Y_dim, Z_dim=Z_dim,
                                          l2_reg=l2_reg)
    jax.block_until_ready((yhat2, zhat2))
    yhat2_r, zhat2_r, _ = reference_forward(x2, params, l2_reg=l2_reg)
    assert yhat2.shape == (B2, Y_dim) and zhat2.shape == (B2, Z_dim)
    assert jnp.allclose(yhat2, yhat2_r, atol=2e-3, rtol=2e-3)
    assert jnp.allclose(zhat2, zhat2_r, atol=2e-3, rtol=2e-3)

    print("KERNEL_OK")
</pallas_src>

<mosaic_0001>
module attributes {stable_mosaic.version = 11 : i64} {
  func.func @autoencoder_kernel(%arg0: i32, %arg1: memref<16x32xbf16, #tpu.memory_space<vmem>>, %arg2: memref<32x128xbf16, #tpu.memory_space<vmem>>, %arg3: memref<9x128x128xbf16, #tpu.memory_space<vmem>>, %arg4: memref<9x128xf32, #tpu.memory_space<vmem>>, %arg5: memref<16x128xf32, #tpu.memory_space<vmem>>) attributes {dimension_semantics = [#tpu.dimension_semantics<parallel>], iteration_bounds = array<i64: 1>, scalar_prefetch = 0 : i64, scratch_operands = 0 : i64, tpu.core_type = #tpu.core_type<tc>, window_params = [{transform_indices = @transform_0, window_bounds = array<i64: 16, 32>}, {pipeline_mode = #tpu.pipeline_mode<synchronous>, transform_indices = @transform_1, window_bounds = array<i64: 32, 128>}, {pipeline_mode = #tpu.pipeline_mode<synchronous>, transform_indices = @transform_2, window_bounds = array<i64: 9, 128, 128>}, {pipeline_mode = #tpu.pipeline_mode<synchronous>, transform_indices = @transform_3, window_bounds = array<i64: 9, 128>}, {transform_indices = @transform_4, window_bounds = array<i64: 16, 128>}]} {
    %c0_i32 = arith.constant 0 : i32
    %c16_i32 = arith.constant 16 : i32
    %0 = arith.muli %c0_i32, %c16_i32 : i32
    %1 = tpu.assume_multiple %0, 16 : i32
    %2 = arith.index_cast %1 : i32 to index
    %c0 = arith.constant 0 : index
    %3 = vector.load %arg1[%2, %c0] : memref<16x32xbf16, #tpu.memory_space<vmem>>, vector<16x32xbf16>
    %c0_0 = arith.constant 0 : index
    %c0_1 = arith.constant 0 : index
    %4 = vector.load %arg2[%c0_0, %c0_1] : memref<32x128xbf16, #tpu.memory_space<vmem>>, vector<32x128xbf16>
    %cst = arith.constant dense<0.000000e+00> : vector<16x128xf32>
    %5 = tpu.matmul %3, %4, %cst {dimension_numbers = #tpu.dot_dimension_numbers<[1], [0], [0], [1], [0, 0, 1, 1], [], []>} : vector<16x32xbf16>, vector<32x128xbf16>, vector<16x128xf32> -> vector<16x128xf32>
    %c0_2 = arith.constant 0 : index
    %c0_3 = arith.constant 0 : index
    %6 = vector.load %arg4[%c0_2, %c0_3] : memref<9x128xf32, #tpu.memory_space<vmem>>, vector<1x128xf32>
    %7 = vector.broadcast %6 : vector<1x128xf32> to vector<16x128xf32>
    %8 = arith.addf %5, %7 : vector<16x128xf32>
    %cst_4 = arith.constant 0.000000e+00 : f32
    %9 = vector.broadcast %cst_4 : f32 to vector<16x128xf32>
    %10 = arith.maximumf %8, %9 : vector<16x128xf32>
    %11 = arith.truncf %10 : vector<16x128xf32> to vector<16x128xbf16>
    %c0_5 = arith.constant 0 : index
    %c0_6 = arith.constant 0 : index
    %c0_7 = arith.constant 0 : index
    %12 = vector.load %arg3[%c0_5, %c0_6, %c0_7] : memref<9x128x128xbf16, #tpu.memory_space<vmem>>, vector<1x128x128xbf16>
    %13 = vector.shape_cast %12 : vector<1x128x128xbf16> to vector<128x128xbf16>
    %cst_8 = arith.constant dense<0.000000e+00> : vector<16x128xf32>
    %14 = tpu.matmul %11, %13, %cst_8 {dimension_numbers = #tpu.dot_dimension_numbers<[1], [0], [0], [1], [0, 0, 1, 1], [], []>} : vector<16x128xbf16>, vector<128x128xbf16>, vector<16x128xf32> -> vector<16x128xf32>
    %c1 = arith.constant 1 : index
    %c0_9 = arith.constant 0 : index
    %15 = vector.load %arg4[%c1, %c0_9] : memref<9x128xf32, #tpu.memory_space<vmem>>, vector<1x128xf32>
    %16 = vector.broadcast %15 : vector<1x128xf32> to vector<16x128xf32>
    %17 = arith.addf %14, %16 : vector<16x128xf32>
    %cst_10 = arith.constant 0.000000e+00 : f32
    %18 = vector.broadcast %cst_10 : f32 to vector<16x128xf32>
    %19 = arith.maximumf %17, %18 : vector<16x128xf32>
    %20 = arith.truncf %19 : vector<16x128xf32> to vector<16x128xbf16>
    %c1_11 = arith.constant 1 : index
    %c0_12 = arith.constant 0 : index
    %c0_13 = arith.constant 0 : index
    %21 = vector.load %arg3[%c1_11, %c0_12, %c0_13] : memref<9x128x128xbf16, #tpu.memory_space<vmem>>, vector<1x128x128xbf16>
    %22 = vector.shape_cast %21 : vector<1x128x128xbf16> to vector<128x128xbf16>
    %cst_14 = arith.constant dense<0.000000e+00> : vector<16x128xf32>
    %23 = tpu.matmul %20, %22, %cst_14 {dimension_numbers = #tpu.dot_dimension_numbers<[1], [0], [0], [1], [0, 0, 1, 1], [], []>} : vector<16x128xbf16>, vector<128x128xbf16>, vector<16x128xf32> -> vector<16x128xf32>
    %c2 = arith.constant 2 : index
    %c0_15 = arith.constant 0 : index
    %24 = vector.load %arg4[%c2, %c0_15] : memref<9x128xf32, #tpu.memory_space<vmem>>, vector<1x128xf32>
    %25 = vector.broadcast %24 : vector<1x128xf32> to vector<16x128xf32>
    %26 = arith.addf %23, %25 : vector<16x128xf32>
    %27 = arith.truncf %26 : vector<16x128xf32> to vector<16x128xbf16>
    %c2_16 = arith.constant 2 : index
    %c0_17 = arith.constant 0 : index
    %c0_18 = arith.constant 0 : index
    %28 = vector.load %arg3[%c2_16, %c0_17, %c0_18] : memref<9x128x128xbf16, #tpu.memory_space<vmem>>, vector<1x128x128xbf16>
    %29 = vector.shape_cast %28 : vector<1x128x128xbf16> to vector<128x128xbf16>
    %cst_19 = arith.constant dense<0.000000e+00> : vector<16x128xf32>
    %30 = tpu.matmul %27, %29, %cst_19 {dimension_numbers = #tpu.dot_dimension_numbers<[1], [0], [0], [1], [0, 0, 1, 1], [], []>} : vector<16x128xbf16>, vector<128x128xbf16>, vector<16x128xf32> -> vector<16x128xf32>
    %c3 = arith.constant 3 : index
    %c0_20 = arith.constant 0 : index
    %31 = vector.load %arg4[%c3, %c0_20] : memref<9x128xf32, #tpu.memory_space<vmem>>, vector<1x128xf32>
    %32 = vector.broadcast %31 : vector<1x128xf32> to vector<16x128xf32>
    %33 = arith.addf %30, %32 : vector<16x128xf32>
    %cst_21 = arith.constant 0.000000e+00 : f32
    %34 = vector.broadcast %cst_21 : f32 to vector<16x128xf32>
    %35 = arith.maximumf %33, %34 : vector<16x128xf32>
    %36 = arith.truncf %35 : vector<16x128xf32> to vector<16x128xbf16>
    %c3_22 = arith.constant 3 : index
    %c0_23 = arith.constant 0 : index
    %c0_24 = arith.constant 0 : index
    %37 = vector.load %arg3[%c3_22, %c0_23, %c0_24] : memref<9x128x128xbf16, #tpu.memory_space<vmem>>, vector<1x128x128xbf16>
    %38 = vector.shape_cast %37 : vector<1x128x128xbf16> to vector<128x128xbf16>
    %cst_25 = arith.constant dense<0.000000e+00> : vector<16x128xf32>
    %39 = tpu.matmul %36, %38, %cst_25 {dimension_numbers = #tpu.dot_dimension_numbers<[1], [0], [0], [1], [0, 0, 1, 1], [], []>} : vector<16x128xbf16>, vector<128x128xbf16>, vector<16x128xf32> -> vector<16x128xf32>
    %c4 = arith.constant 4 : index
    %c0_26 = arith.constant 0 : index
    %40 = vector.load %arg4[%c4, %c0_26] : memref<9x128xf32, #tpu.memory_space<vmem>>, vector<1x128xf32>
    %41 = vector.broadcast %40 : vector<1x128xf32> to vector<16x128xf32>
    %42 = arith.addf %39, %41 : vector<16x128xf32>
    %cst_27 = arith.constant 0.000000e+00 : f32
    %43 = vector.broadcast %cst_27 : f32 to vector<16x128xf32>
    %44 = arith.maximumf %42, %43 : vector<16x128xf32>
    %45 = arith.truncf %44 : vector<16x128xf32> to vector<16x128xbf16>
    %c4_28 = arith.constant 4 : index
    %c0_29 = arith.constant 0 : index
    %c0_30 = arith.constant 0 : index
    %46 = vector.load %arg3[%c4_28, %c0_29, %c0_30] : memref<9x128x128xbf16, #tpu.memory_space<vmem>>, vector<1x128x128xbf16>
    %47 = vector.shape_cast %46 : vector<1x128x128xbf16> to vector<128x128xbf16>
    %cst_31 = arith.constant dense<0.000000e+00> : vector<16x128xf32>
    %48 = tpu.matmul %45, %47, %cst_31 {dimension_numbers = #tpu.dot_dimension_numbers<[1], [0], [0], [1], [0, 0, 1, 1], [], []>} : vector<16x128xbf16>, vector<128x128xbf16>, vector<16x128xf32> -> vector<16x128xf32>
    %c5 = arith.constant 5 : index
    %c0_32 = arith.constant 0 : index
    %49 = vector.load %arg4[%c5, %c0_32] : memref<9x128xf32, #tpu.memory_space<vmem>>, vector<1x128xf32>
    %50 = vector.broadcast %49 : vector<1x128xf32> to vector<16x128xf32>
    %51 = arith.addf %48, %50 : vector<16x128xf32>
    %52 = arith.truncf %51 : vector<16x128xf32> to vector<16x128xbf16>
    %c5_33 = arith.constant 5 : index
    %c0_34 = arith.constant 0 : index
    %c0_35 = arith.constant 0 : index
    %53 = vector.load %arg3[%c5_33, %c0_34, %c0_35] : memref<9x128x128xbf16, #tpu.memory_space<vmem>>, vector<1x128x128xbf16>
    %54 = vector.shape_cast %53 : vector<1x128x128xbf16> to vector<128x128xbf16>
    %cst_36 = arith.constant dense<0.000000e+00> : vector<16x128xf32>
    %55 = tpu.matmul %52, %54, %cst_36 {dimension_numbers = #tpu.dot_dimension_numbers<[1], [0], [0], [1], [0, 0, 1, 1], [], []>} : vector<16x128xbf16>, vector<128x128xbf16>, vector<16x128xf32> -> vector<16x128xf32>
    %c6 = arith.constant 6 : index
    %c0_37 = arith.constant 0 : index
    %c0_38 = arith.constant 0 : index
    %56 = vector.load %arg3[%c6, %c0_37, %c0_38] : memref<9x128x128xbf16, #tpu.memory_space<vmem>>, vector<1x128x128xbf16>
    %57 = vector.shape_cast %56 : vector<1x128x128xbf16> to vector<128x128xbf16>
    %cst_39 = arith.constant dense<0.000000e+00> : vector<16x128xf32>
    %58 = tpu.matmul %27, %57, %cst_39 {dimension_numbers = #tpu.dot_dimension_numbers<[1], [0], [0], [1], [0, 0, 1, 1], [], []>} : vector<16x128xbf16>, vector<128x128xbf16>, vector<16x128xf32> -> vector<16x128xf32>
    %59 = arith.addf %55, %58 : vector<16x128xf32>
    %c6_40 = arith.constant 6 : index
    %c0_41 = arith.constant 0 : index
    %60 = vector.load %arg4[%c6_40, %c0_41] : memref<9x128xf32, #tpu.memory_space<vmem>>, vector<1x128xf32>
    %61 = vector.broadcast %60 : vector<1x128xf32> to vector<16x128xf32>
    %62 = arith.addf %59, %61 : vector<16x128xf32>
    %cst_42 = arith.constant 0.000000e+00 : f32
    %63 = vector.broadcast %cst_42 : f32 to vector<16x128xf32>
    %64 = arith.maximumf %62, %63 : vector<16x128xf32>
    %65 = arith.truncf %64 : vector<16x128xf32> to vector<16x128xbf16>
    %c7 = arith.constant 7 : index
    %c0_43 = arith.constant 0 : index
    %c0_44 = arith.constant 0 : index
    %66 = vector.load %arg3[%c7, %c0_43, %c0_44] : memref<9x128x128xbf16, #tpu.memory_space<vmem>>, vector<1x128x128xbf16>
    %67 = vector.shape_cast %66 : vector<1x128x128xbf16> to vector<128x128xbf16>
    %cst_45 = arith.constant dense<0.000000e+00> : vector<16x128xf32>
    %68 = tpu.matmul %65, %67, %cst_45 {dimension_numbers = #tpu.dot_dimension_numbers<[1], [0], [0], [1], [0, 0, 1, 1], [], []>} : vector<16x128xbf16>, vector<128x128xbf16>, vector<16x128xf32> -> vector<16x128xf32>
    %c7_46 = arith.constant 7 : index
    %c0_47 = arith.constant 0 : index
    %69 = vector.load %arg4[%c7_46, %c0_47] : memref<9x128xf32, #tpu.memory_space<vmem>>, vector<1x128xf32>
    %70 = vector.broadcast %69 : vector<1x128xf32> to vector<16x128xf32>
    %71 = arith.addf %68, %70 : vector<16x128xf32>
    %cst_48 = arith.constant 0.000000e+00 : f32
    %72 = vector.broadcast %cst_48 : f32 to vector<16x128xf32>
    %73 = arith.maximumf %71, %72 : vector<16x128xf32>
    %74 = arith.truncf %73 : vector<16x128xf32> to vector<16x128xbf16>
    %c8 = arith.constant 8 : index
    %c0_49 = arith.constant 0 : index
    %c0_50 = arith.constant 0 : index
    %75 = vector.load %arg3[%c8, %c0_49, %c0_50] : memref<9x128x128xbf16, #tpu.memory_space<vmem>>, vector<1x128x128xbf16>
    %76 = vector.shape_cast %75 : vector<1x128x128xbf16> to vector<128x128xbf16>
    %cst_51 = arith.constant dense<0.000000e+00> : vector<16x128xf32>
    %77 = tpu.matmul %74, %76, %cst_51 {dimension_numbers = #tpu.dot_dimension_numbers<[1], [0], [0], [1], [0, 0, 1, 1], [], []>} : vector<16x128xbf16>, vector<128x128xbf16>, vector<16x128xf32> -> vector<16x128xf32>
    %c8_52 = arith.constant 8 : index
    %c0_53 = arith.constant 0 : index
    %78 = vector.load %arg4[%c8_52, %c0_53] : memref<9x128xf32, #tpu.memory_space<vmem>>, vector<1x128xf32>
    %79 = vector.broadcast %78 : vector<1x128xf32> to vector<16x128xf32>
    %80 = arith.addf %77, %79 : vector<16x128xf32>
    %81 = arith.addf %80, %51 : vector<16x128xf32>
    %82 = arith.index_cast %1 : i32 to index
    %c0_54 = arith.constant 0 : index
    %83 = vector.load %arg5[%82, %c0_54] : memref<16x128xf32, #tpu.memory_space<vmem>>, vector<16x128xf32>
    tpu.vector_store %arg5[%82, %c0_54], %81 {strides = array<i32>} : memref<16x128xf32, #tpu.memory_space<vmem>>, vector<16x128xf32>,
    %c1_i32 = arith.constant 1 : i32
    return
  }
  func.func @transform_0(%arg0: i32) -> (i32, i32) {
    %c0_i32 = arith.constant 0 : i32
    %c0_i32_0 = arith.constant 0 : i32
    return %arg0, %c0_i32 : i32, i32
  }
  func.func @transform_1(%arg0: i32) -> (i32, i32) {
    %c0_i32 = arith.constant 0 : i32
    %c0_i32_0 = arith.constant 0 : i32
    %c0_i32_1 = arith.constant 0 : i32
    return %c0_i32, %c0_i32_0 : i32, i32
  }
  func.func @transform_2(%arg0: i32) -> (i32, i32, i32) {
    %c0_i32 = arith.constant 0 : i32
    %c0_i32_0 = arith.constant 0 : i32
    %c0_i32_1 = arith.constant 0 : i32
    %c0_i32_2 = arith.constant 0 : i32
    return %c0_i32, %c0_i32_0, %c0_i32_1 : i32, i32, i32
  }
  func.func @transform_3(%arg0: i32) -> (i32, i32) {
    %c0_i32 = arith.constant 0 : i32
    %c0_i32_0 = arith.constant 0 : i32
    %c0_i32_1 = arith.constant 0 : i32
    return %c0_i32, %c0_i32_0 : i32, i32
  }
  func.func @transform_4(%arg0: i32) -> (i32, i32) {
    %c0_i32 = arith.constant 0 : i32
    %c0_i32_0 = arith.constant 0 : i32
    return %arg0, %c0_i32 : i32, i32
  }
}

</mosaic_0001>

<llo_original>
// kernel: autoencoder_forward.1
$region0: #{autoencoder_forward.1}
  #allocation0 [shape = 'u32[]', space=smem, size = 0x4, offset = 0x4, fixed_abs, tag = 'smem constant byte address 0x4 - core index']
  #allocation1 [shape = 'u32[144,128]{1,0:T(1,128)}', space=vmem, size = 0x12000, scoped, tag = 'internal scratch']
  %s0 = inlined_call_operand.vmem [shape: bf16[16,32], index: 0, kind: input, shape index: {}]
  %s1 = inlined_call_operand.vmem [shape: bf16[32,128], index: 1, kind: input, shape index: {}]
  %s2 = inlined_call_operand.hbm [shape: bf16[9,128,128], index: 2, kind: input, shape index: {}]
  %s3 = inlined_call_operand.vmem [shape: f32[9,128], index: 3, kind: input, shape index: {}]
  %s4 = inlined_call_operand.vmem [shape: f32[16,128], index: 4, kind: output, shape index: {}]
  %s5 = sld [smem:[#allocation0]]
  $region30: #{autoencoder_forward.1} parent=0
    _
  %s7 = ssub.s32 1, %s5
  %s8 = scalar_select 0, %s7, %s5
  $region1: #{autoencoder_forward.1} parent=0
    #allocation2 [shape = 'u8[294912]{0}', space=vmem, size = 0x48000, scoped, tag = 'input window, operand 2, single buffered']
    #allocation3 [shape = 's32[1]{0}', space=sflag, size = 0x4, scoped, tag = 'scoped memory for autoencoder_forward.1']
    %9 = vsyncpa [#allocation3], 0
    // Predicated region
    $region2: #{autoencoder_forward.1} parent=1 // pred_check
      _
    $region3: #{autoencoder_forward.1} parent=1 // pred_check_branch
      %11 = sbr.rel (0) target = $region5
    $region4: #{autoencoder_forward.1} parent=1 // pred_region
      _
    $region5: #{autoencoder_forward.1} parent=1 // pred_fallthru
      _
    // Predicated region
    $region6: #{autoencoder_forward.1} parent=1 // pred_check
      _
    $region7: #{autoencoder_forward.1} parent=1 // pred_check_branch
      %13 = sbr.rel (0) target = $region9
    $region8: #{autoencoder_forward.1} parent=1 // pred_region
      _
    $region9: #{autoencoder_forward.1} parent=1 // pred_fallthru
      _
    // Predicated region
    $region10: #{autoencoder_forward.1} parent=1 // pred_check
      _
    $region11: #{autoencoder_forward.1} parent=1 // pred_check_branch
      %15 = sbr.rel (0) target = $region13
    $region12: #{autoencoder_forward.1} parent=1 // pred_region
      %s17 = ssub.s32 9216, 9216
      %18 = vsyncadd [#allocation3], %s17
      %s19 = sshll.u32 [#allocation2], 4
      %s20 = int_to_ptr.vmem [resolvable:$true] %s19
      %25 = dma.hbm_to_vmem [thread:$0]  %s2, 9216, %s20, [#allocation3], 64, 64, 4
    $region13: #{autoencoder_forward.1} parent=1 // pred_fallthru
      _
    // Predicated region
    $region14: #{autoencoder_forward.1} parent=1 // pred_check
      _
    $region15: #{autoencoder_forward.1} parent=1 // pred_check_branch
      %27 = sbr.rel (0) target = $region17
    $region16: #{autoencoder_forward.1} parent=1 // pred_region
      _
    $region17: #{autoencoder_forward.1} parent=1 // pred_fallthru
      _
    // Predicated region
    $region18: #{autoencoder_forward.1} parent=1 // pred_check
      _
    $region19: #{autoencoder_forward.1} parent=1 // pred_check_branch
      %29 = sbr.rel (0) target = $region21
    $region20: #{autoencoder_forward.1} parent=1 // pred_region
      %30 = dma.done [#allocation3], 9216
    $region21: #{autoencoder_forward.1} parent=1 // pred_fallthru
      _
    %v32 = vld [vmem:[%s0] sm:$0xf]
    %v33 = vld [vmem:[%s0 + $0x4] sm:$0xf]
    %v34 = vld [vmem:[%s1] sm:$0xf]
    %v35 = vld [vmem:[%s1 + $0x4] sm:$0xf]
    %v36 = vld [vmem:[%s1 + $0x8] sm:$0xf]
    %v37 = vld [vmem:[%s1 + $0xc] sm:$0xf]
    %v38 = vld [vmem:[%s3] sm:$0x1]
    %v39 = vlaneseq
    %v40 = vshrl.u32 %v39, 7
    %v41 = vsub.s32 0, %v40
    %v42 = vrot.slane %v38, %v41
    %v45 = vunpack.c.l.b16 %v32
    %v46 = vunpack.c.l.b16 %v33
    %v47 = vpack.c.b16 %v46, %v45
    %v52 = vunpack.c.l.b16 %v34
    %v53 = vunpack.c.l.b16 %v35
    %v54 = vunpack.c.l.b16 %v36
    %v55 = vunpack.c.l.b16 %v37
    %v56 = vpack.c.b16 %v53, %v52
    %v57 = vpack.c.b16 %v55, %v54
    %vm60 = vcmask 261120
    %v62 = vsel %vm60, %v47, 0
    %64 = vmatprep.subr.bf16.mxu0 0
    %65 = vmatpush1.bf16.msra.mxu0 %v56
    %66 = vmatprep.subr.bf16.mxu0 0
    %67 = vmatpush1.bf16.msra.mxu0 %v57
    %68 = vmatprep.subr.bf16.mxu0 0
    %69 = vmatpush1.bf16.msra.mxu0 0
    %70 = vmatprep.subr.bf16.mxu0 0
    %71 = vmatpush1.bf16.msra.mxu0 0
    %72 = vmatprep.subr.bf16.mxu0 0
    %73 = vmatpush1.bf16.msra.mxu0 0
    %74 = vmatprep.subr.bf16.mxu0 0
    %75 = vmatpush1.bf16.msra.mxu0 0
    %76 = vmatprep.subr.bf16.mxu0 0
    %77 = vmatpush1.bf16.msra.mxu0 0
    %78 = vmatprep.subr.bf16.mxu0 0
    %79 = vmatpush1.bf16.msra.mxu0 0
    %80 = vmatprep.subr.bf16.mxu0 0
    %81 = vmatpush1.bf16.msra.mxu0 0
    %82 = vmatprep.subr.bf16.mxu0 0
    %83 = vmatpush1.bf16.msra.mxu0 0
    %84 = vmatprep.subr.bf16.mxu0 0
    %85 = vmatpush1.bf16.msra.mxu0 0
    %86 = vmatprep.subr.bf16.mxu0 0
    %87 = vmatpush1.bf16.msra.mxu0 0
    %88 = vmatprep.subr.bf16.mxu0 0
    %89 = vmatpush1.bf16.msra.mxu0 0
    %90 = vmatprep.subr.bf16.mxu0 0
    %91 = vmatpush1.bf16.msra.mxu0 0
    %92 = vmatprep.subr.bf16.mxu0 0
    %93 = vmatpush1.bf16.msra.mxu0 0
    %94 = vmatprep.subr.bf16.mxu0 0
    %95 = vmatpush1.bf16.msra.mxu0 0
    %96 = vmatprep.mubr.bf16.mxu0 0
    %97 = vmatmul.mubr.bf16.gmra.mrb[0].mxu0 %v62
    %v98 = vpop.f32.mrb[0].mxu0
    %v99 = vadd.f32 %v42, %v98
    %v100 = vpop.f32.mrb[0].mxu0
    %v101 = vpop.f32.mrb[0].mxu0
    %v102 = vadd.f32 %v42, %v101
    %v103 = vpop.f32.mrb[0].mxu0
    %104 = vdwg.mxu0
    %v105 = vmax.f32 %v99, 0.0
    %v106 = vmax.f32 %v102, 0.0
    %v107 = vpack.c.bf16 %v106, %v105
    %v108 = vld [vmem:[#allocation2] sm:$0xf]
    %v109 = vld [vmem:[#allocation2 + $0x4] sm:$0xf]
    %v110 = vld [vmem:[#allocation2 + $0x8] sm:$0xf]
    %v111 = vld [vmem:[#allocation2 + $0xc] sm:$0xf]
    %v112 = vld [vmem:[#allocation2 + $0x10] sm:$0xf]
    %v113 = vld [vmem:[#allocation2 + $0x14] sm:$0xf]
    %v114 = vld [vmem:[#allocation2 + $0x18] sm:$0xf]
    %v115 = vld [vmem:[#allocation2 + $0x1c] sm:$0xf]
    %v116 = vld [vmem:[#allocation2 + $0x20] sm:$0xf]
    %v117 = vld [vmem:[#allocation2 + $0x24] sm:$0xf]
    %v118 = vld [vmem:[#allocation2 + $0x28] sm:$0xf]
    %v119 = vld [vmem:[#allocation2 + $0x2c] sm:$0xf]
    %v120 = vld [vmem:[#allocation2 + $0x30] sm:$0xf]
    %v121 = vld [vmem:[#allocation2 + $0x34] sm:$0xf]
    %v122 = vld [vmem:[#allocation2 + $0x38] sm:$0xf]
    %v123 = vld [vmem:[#allocation2 + $0x3c] sm:$0xf]
    %v124 = vld [vmem:[%s3 + $0x1] sm:$0x1]
    %v125 = vlaneseq
    %v126 = vshrl.u32 %v125, 7
    %v127 = vsub.s32 0, %v126
    %v128 = vrot.slane %v124, %v127
    %v145 = vunpack.c.l.b16 %v108
    %v146 = vunpack.c.l.b16 %v109
    %v147 = vunpack.c.l.b16 %v110
    %v148 = vunpack.c.l.b16 %v111
    %v149 = vunpack.c.l.b16 %v112
    %v150 = vunpack.c.l.b16 %v113
    %v151 = vunpack.c.l.b16 %v114
    %v152 = vunpack.c.l.b16 %v115
    %v153 = vunpack.c.l.b16 %v116
    %v154 = vunpack.c.l.b16 %v117
    %v155 = vunpack.c.l.b16 %v118
    %v156 = vunpack.c.l.b16 %v119
    %v157 = vunpack.c.l.b16 %v120
    %v158 = vunpack.c.l.b16 %v121
    %v159 = vunpack.c.l.b16 %v122
    %v160 = vunpack.c.l.b16 %v123
    %v161 = vpack.c.b16 %v146, %v145
    %v162 = vpack.c.b16 %v148, %v147
    %v163 = vpack.c.b16 %v150, %v149
    %v164 = vpack.c.b16 %v152, %v151
    %v165 = vpack.c.b16 %v154, %v153
    %v166 = vpack.c.b16 %v156, %v155
    %v167 = vpack.c.b16 %v158, %v157
    %v168 = vpack.c.b16 %v160, %v159
    %177 = vmatprep.subr.bf16.mxu0 0
    %178 = vmatpush1.bf16.msra.mxu0 %v161
    %179 = vmatprep.subr.bf16.mxu0 0
    %180 = vmatpush1.bf16.msra.mxu0 %v162
    %181 = vmatprep.subr.bf16.mxu0 0
    %182 = vmatpush1.bf16.msra.mxu0 %v163
    %183 = vmatprep.subr.bf16.mxu0 0
    %184 = vmatpush1.bf16.msra.mxu0 %v164
    %185 = vmatprep.subr.bf16.mxu0 0
    %186 = vmatpush1.bf16.msra.mxu0 %v165
    %187 = vmatprep.subr.bf16.mxu0 0
    %188 = vmatpush1.bf16.msra.mxu0 %v166
    %189 = vmatprep.subr.bf16.mxu0 0
    %190 = vmatpush1.bf16.msra.mxu0 %v167
    %191 = vmatprep.subr.bf16.mxu0 0
    %192 = vmatpush1.bf16.msra.mxu0 %v168
    %193 = vmatprep.subr.bf16.mxu0 0
    %194 = vmatpush1.bf16.msra.mxu0 0
    %195 = vmatprep.subr.bf16.mxu0 0
    %196 = vmatpush1.bf16.msra.mxu0 0
    %197 = vmatprep.subr.bf16.mxu0 0
    %198 = vmatpush1.bf16.msra.mxu0 0
    %199 = vmatprep.subr.bf16.mxu0 0
    %200 = vmatpush1.bf16.msra.mxu0 0
    %201 = vmatprep.subr.bf16.mxu0 0
    %202 = vmatpush1.bf16.msra.mxu0 0
    %203 = vmatprep.subr.bf16.mxu0 0
    %204 = vmatpush1.bf16.msra.mxu0 0
    %205 = vmatprep.subr.bf16.mxu0 0
    %206 = vmatpush1.bf16.msra.mxu0 0
    %207 = vmatprep.subr.bf16.mxu0 0
    %208 = vmatpush1.bf16.msra.mxu0 0
    %209 = vmatprep.mubr.bf16.mxu0 0
    %210 = vmatmul.mubr.bf16.gmra.mrb[0].mxu0 %v107
    %v211 = vpop.f32.mrb[0].mxu0
    %v212 = vadd.f32 %v128, %v211
    %v213 = vpop.f32.mrb[0].mxu0
    %v214 = vpop.f32.mrb[0].mxu0
    %v215 = vadd.f32 %v128, %v214
    %v216 = vpop.f32.mrb[0].mxu0
    %217 = vdwg.mxu0
    %v218 = vmax.f32 %v212, 0.0
    %v219 = vmax.f32 %v215, 0.0
    %v220 = vpack.c.bf16 %v219, %v218
    %s221 = scalar_lea.vmem [#allocation2], 64
    %v222 = vld [vmem:[%s221] sm:$0xf]
    %v223 = vld [vmem:[%s221 + $0x4] sm:$0xf]
    %v224 = vld [vmem:[%s221 + $0x8] sm:$0xf]
    %v225 = vld [vmem:[%s221 + $0xc] sm:$0xf]
    %v226 = vld [vmem:[%s221 + $0x10] sm:$0xf]
    %v227 = vld [vmem:[%s221 + $0x14] sm:$0xf]
    %v228 = vld [vmem:[%s221 + $0x18] sm:$0xf]
    %v229 = vld [vmem:[%s221 + $0x1c] sm:$0xf]
    %v230 = vld [vmem:[%s221 + $0x20] sm:$0xf]
    %v231 = vld [vmem:[%s221 + $0x24] sm:$0xf]
    %v232 = vld [vmem:[%s221 + $0x28] sm:$0xf]
    %v233 = vld [vmem:[%s221 + $0x2c] sm:$0xf]
    %v234 = vld [vmem:[%s221 + $0x30] sm:$0xf]
    %v235 = vld [vmem:[%s221 + $0x34] sm:$0xf]
    %v236 = vld [vmem:[%s221 + $0x38] sm:$0xf]
    %v237 = vld [vmem:[%s221 + $0x3c] sm:$0xf]
    %v238 = vld [vmem:[%s3 + $0x2] sm:$0x1]
    %v239 = vlaneseq
    %v240 = vshrl.u32 %v239, 7
    %v241 = vsub.s32 0, %v240
    %v242 = vrot.slane %v238, %v241
    %v259 = vunpack.c.l.b16 %v222
    %v260 = vunpack.c.l.b16 %v223
    %v261 = vunpack.c.l.b16 %v224
    %v262 = vunpack.c.l.b16 %v225
    %v263 = vunpack.c.l.b16 %v226
    %v264 = vunpack.c.l.b16 %v227
    %v265 = vunpack.c.l.b16 %v228
    %v266 = vunpack.c.l.b16 %v229
    %v267 = vunpack.c.l.b16 %v230
    %v268 = vunpack.c.l.b16 %v231
    %v269 = vunpack.c.l.b16 %v232
    %v270 = vunpack.c.l.b16 %v233
    %v271 = vunpack.c.l.b16 %v234
    %v272 = vunpack.c.l.b16 %v235
    %v273 = vunpack.c.l.b16 %v236
    %v274 = vunpack.c.l.b16 %v237
    %v275 = vpack.c.b16 %v260, %v259
    %v276 = vpack.c.b16 %v262, %v261
    %v277 = vpack.c.b16 %v264, %v263
    %v278 = vpack.c.b16 %v266, %v265
    %v279 = vpack.c.b16 %v268, %v267
    %v280 = vpack.c.b16 %v270, %v269
    %v281 = vpack.c.b16 %v272, %v271
    %v282 = vpack.c.b16 %v274, %v273
    %291 = vmatprep.subr.bf16.mxu0 0
    %292 = vmatpush1.bf16.msra.mxu0 %v275
    %293 = vmatprep.subr.bf16.mxu0 0
    %294 = vmatpush1.bf16.msra.mxu0 %v276
    %295 = vmatprep.subr.bf16.mxu0 0
    %296 = vmatpush1.bf16.msra.mxu0 %v277
    %297 = vmatprep.subr.bf16.mxu0 0
    %298 = vmatpush1.bf16.msra.mxu0 %v278
    %299 = vmatprep.subr.bf16.mxu0 0
    %300 = vmatpush1.bf16.msra.mxu0 %v279
    %301 = vmatprep.subr.bf16.mxu0 0
    %302 = vmatpush1.bf16.msra.mxu0 %v280
    %303 = vmatprep.subr.bf16.mxu0 0
    %304 = vmatpush1.bf16.msra.mxu0 %v281
    %305 = vmatprep.subr.bf16.mxu0 0
    %306 = vmatpush1.bf16.msra.mxu0 %v282
    %307 = vmatprep.subr.bf16.mxu0 0
    %308 = vmatpush1.bf16.msra.mxu0 0
    %309 = vmatprep.subr.bf16.mxu0 0
    %310 = vmatpush1.bf16.msra.mxu0 0
    %311 = vmatprep.subr.bf16.mxu0 0
    %312 = vmatpush1.bf16.msra.mxu0 0
    %313 = vmatprep.subr.bf16.mxu0 0
    %314 = vmatpush1.bf16.msra.mxu0 0
    %315 = vmatprep.subr.bf16.mxu0 0
    %316 = vmatpush1.bf16.msra.mxu0 0
    %317 = vmatprep.subr.bf16.mxu0 0
    %318 = vmatpush1.bf16.msra.mxu0 0
    %319 = vmatprep.subr.bf16.mxu0 0
    %320 = vmatpush1.bf16.msra.mxu0 0
    %321 = vmatprep.subr.bf16.mxu0 0
    %322 = vmatpush1.bf16.msra.mxu0 0
    %323 = vmatprep.mubr.bf16.mxu0 0
    %324 = vmatmul.mubr.bf16.gmra.mrb[0].mxu0 %v220
    %v325 = vpop.f32.mrb[0].mxu0
    %v326 = vadd.f32 %v242, %v325
    %v327 = vpop.f32.mrb[0].mxu0
    %v328 = vpop.f32.mrb[0].mxu0
    %v329 = vadd.f32 %v242, %v328
    %v330 = vpop.f32.mrb[0].mxu0
    %331 = vdwg.mxu0
    %v332 = vpack.c.bf16 %v329, %v326
    %s333 = scalar_lea.vmem [#allocation2], 128
    %v334 = vld [vmem:[%s333] sm:$0xf]
    %v335 = vld [vmem:[%s333 + $0x4] sm:$0xf]
    %v336 = vld [vmem:[%s333 + $0x8] sm:$0xf]
    %v337 = vld [vmem:[%s333 + $0xc] sm:$0xf]
    %v338 = vld [vmem:[%s333 + $0x10] sm:$0xf]
    %v339 = vld [vmem:[%s333 + $0x14] sm:$0xf]
    %v340 = vld [vmem:[%s333 + $0x18] sm:$0xf]
    %v341 = vld [vmem:[%s333 + $0x1c] sm:$0xf]
    %v342 = vld [vmem:[%s333 + $0x20] sm:$0xf]
    %v343 = vld [vmem:[%s333 + $0x24] sm:$0xf]
    %v344 = vld [vmem:[%s333 + $0x28] sm:$0xf]
    %v345 = vld [vmem:[%s333 + $0x2c] sm:$0xf]
    %v346 = vld [vmem:[%s333 + $0x30] sm:$0xf]
    %v347 = vld [vmem:[%s333 + $0x34] sm:$0xf]
    %v348 = vld [vmem:[%s333 + $0x38] sm:$0xf]
    %v349 = vld [vmem:[%s333 + $0x3c] sm:$0xf]
    %v350 = vld [vmem:[%s3 + $0x3] sm:$0x1]
    %v351 = vlaneseq
    %v352 = vshrl.u32 %v351, 7
    %v353 = vsub.s32 0, %v352
    %v354 = vrot.slane %v350, %v353
    %v371 = vunpack.c.l.b16 %v334
    %v372 = vunpack.c.l.b16 %v335
    %v373 = vunpack.c.l.b16 %v336
    %v374 = vunpack.c.l.b16 %v337
    %v375 = vunpack.c.l.b16 %v338
    %v376 = vunpack.c.l.b16 %v339
    %v377 = vunpack.c.l.b16 %v340
    %v378 = vunpack.c.l.b16 %v341
    %v379 = vunpack.c.l.b16 %v342
    %v380 = vunpack.c.l.b16 %v343
    %v381 = vunpack.c.l.b16 %v344
    %v382 = vunpack.c.l.b16 %v345
    %v383 = vunpack.c.l.b16 %v346
    %v384 = vunpack.c.l.b16 %v347
    %v385 = vunpack.c.l.b16 %v348
    %v386 = vunpack.c.l.b16 %v349
    %v387 = vpack.c.b16 %v372, %v371
    %v388 = vpack.c.b16 %v374, %v373
    %v389 = vpack.c.b16 %v376, %v375
    %v390 = vpack.c.b16 %v378, %v377
    %v391 = vpack.c.b16 %v380, %v379
    %v392 = vpack.c.b16 %v382, %v381
    %v393 = vpack.c.b16 %v384, %v383
    %v394 = vpack.c.b16 %v386, %v385
    %403 = vmatprep.subr.bf16.mxu0 0
    %404 = vmatpush1.bf16.msra.mxu0 %v387
    %405 = vmatprep.subr.bf16.mxu0 0
    %406 = vmatpush1.bf16.msra.mxu0 %v388
    %407 = vmatprep.subr.bf16.mxu0 0
    %408 = vmatpush1.bf16.msra.mxu0 %v389
    %409 = vmatprep.subr.bf16.mxu0 0
    %410 = vmatpush1.bf16.msra.mxu0 %v390
    %411 = vmatprep.subr.bf16.mxu0 0
    %412 = vmatpush1.bf16.msra.mxu0 %v391
    %413 = vmatprep.subr.bf16.mxu0 0
    %414 = vmatpush1.bf16.msra.mxu0 %v392
    %415 = vmatprep.subr.bf16.mxu0 0
    %416 = vmatpush1.bf16.msra.mxu0 %v393
    %417 = vmatprep.subr.bf16.mxu0 0
    %418 = vmatpush1.bf16.msra.mxu0 %v394
    %419 = vmatprep.subr.bf16.mxu0 0
    %420 = vmatpush1.bf16.msra.mxu0 0
    %421 = vmatprep.subr.bf16.mxu0 0
    %422 = vmatpush1.bf16.msra.mxu0 0
    %423 = vmatprep.subr.bf16.mxu0 0
    %424 = vmatpush1.bf16.msra.mxu0 0
    %425 = vmatprep.subr.bf16.mxu0 0
    %426 = vmatpush1.bf16.msra.mxu0 0
    %427 = vmatprep.subr.bf16.mxu0 0
    %428 = vmatpush1.bf16.msra.mxu0 0
    %429 = vmatprep.subr.bf16.mxu0 0
    %430 = vmatpush1.bf16.msra.mxu0 0
    %431 = vmatprep.subr.bf16.mxu0 0
    %432 = vmatpush1.bf16.msra.mxu0 0
    %433 = vmatprep.subr.bf16.mxu0 0
    %434 = vmatpush1.bf16.msra.mxu0 0
    %435 = vmatprep.mubr.bf16.mxu0 0
    %436 = vmatmul.mubr.bf16.gmra.mrb[0].mxu0 %v332
    %v437 = vpop.f32.mrb[0].mxu0
    %v438 = vadd.f32 %v354, %v437
    %v439 = vpop.f32.mrb[0].mxu0
    %v440 = vpop.f32.mrb[0].mxu0
    %v441 = vadd.f32 %v354, %v440
    %v442 = vpop.f32.mrb[0].mxu0
    %443 = vdwg.mxu0
    %v444 = vmax.f32 %v438, 0.0
    %v445 = vmax.f32 %v441, 0.0
    %v446 = vpack.c.bf16 %v445, %v444
    %s447 = scalar_lea.vmem [#allocation2], 192
    %v448 = vld [vmem:[%s447] sm:$0xf]
    %v449 = vld [vmem:[%s447 + $0x4] sm:$0xf]
    %v450 = vld [vmem:[%s447 + $0x8] sm:$0xf]
    %v451 = vld [vmem:[%s447 + $0xc] sm:$0xf]
    %v452 = vld [vmem:[%s447 + $0x10] sm:$0xf]
    %v453 = vld [vmem:[%s447 + $0x14] sm:$0xf]
    %v454 = vld [vmem:[%s447 + $0x18] sm:$0xf]
    %v455 = vld [vmem:[%s447 + $0x1c] sm:$0xf]
    %v456 = vld [vmem:[%s447 + $0x20] sm:$0xf]
    %v457 = vld [vmem:[%s447 + $0x24] sm:$0xf]
    %v458 = vld [vmem:[%s447 + $0x28] sm:$0xf]
    %v459 = vld [vmem:[%s447 + $0x2c] sm:$0xf]
    %v460 = vld [vmem:[%s447 + $0x30] sm:$0xf]
    %v461 = vld [vmem:[%s447 + $0x34] sm:$0xf]
    %v462 = vld [vmem:[%s447 + $0x38] sm:$0xf]
    %v463 = vld [vmem:[%s447 + $0x3c] sm:$0xf]
    %v464 = vld [vmem:[%s3 + $0x4] sm:$0x1]
    %v465 = vlaneseq
    %v466 = vshrl.u32 %v465, 7
    %v467 = vsub.s32 0, %v466
    %v468 = vrot.slane %v464, %v467
    %v485 = vunpack.c.l.b16 %v448
    %v486 = vunpack.c.l.b16 %v449
    %v487 = vunpack.c.l.b16 %v450
    %v488 = vunpack.c.l.b16 %v451
    %v489 = vunpack.c.l.b16 %v452
    %v490 = vunpack.c.l.b16 %v453
    %v491 = vunpack.c.l.b16 %v454
    %v492 = vunpack.c.l.b16 %v455
    %v493 = vunpack.c.l.b16 %v456
    %v494 = vunpack.c.l.b16 %v457
    %v495 = vunpack.c.l.b16 %v458
    %v496 = vunpack.c.l.b16 %v459
    %v497 = vunpack.c.l.b16 %v460
    %v498 = vunpack.c.l.b16 %v461
    %v499 = vunpack.c.l.b16 %v462
    %v500 = vunpack.c.l.b16 %v463
    %v501 = vpack.c.b16 %v486, %v485
    %v502 = vpack.c.b16 %v488, %v487
    %v503 = vpack.c.b16 %v490, %v489
    %v504 = vpack.c.b16 %v492, %v491
    %v505 = vpack.c.b16 %v494, %v493
    %v506 = vpack.c.b16 %v496, %v495
    %v507 = vpack.c.b16 %v498, %v497
    %v508 = vpack.c.b16 %v500, %v499
    %517 = vmatprep.subr.bf16.mxu0 0
    %518 = vmatpush1.bf16.msra.mxu0 %v501
    %519 = vmatprep.subr.bf16.mxu0 0
    %520 = vmatpush1.bf16.msra.mxu0 %v502
    %521 = vmatprep.subr.bf16.mxu0 0
    %522 = vmatpush1.bf16.msra.mxu0 %v503
    %523 = vmatprep.subr.bf16.mxu0 0
    %524 = vmatpush1.bf16.msra.mxu0 %v504
    %525 = vmatprep.subr.bf16.mxu0 0
    %526 = vmatpush1.bf16.msra.mxu0 %v505
    %527 = vmatprep.subr.bf16.mxu0 0
    %528 = vmatpush1.bf16.msra.mxu0 %v506
    %529 = vmatprep.subr.bf16.mxu0 0
    %530 = vmatpush1.bf16.msra.mxu0 %v507
    %531 = vmatprep.subr.bf16.mxu0 0
    %532 = vmatpush1.bf16.msra.mxu0 %v508
    %533 = vmatprep.subr.bf16.mxu0 0
    %534 = vmatpush1.bf16.msra.mxu0 0
    %535 = vmatprep.subr.bf16.mxu0 0
    %536 = vmatpush1.bf16.msra.mxu0 0
    %537 = vmatprep.subr.bf16.mxu0 0
    %538 = vmatpush1.bf16.msra.mxu0 0
    %539 = vmatprep.subr.bf16.mxu0 0
    %540 = vmatpush1.bf16.msra.mxu0 0
    %541 = vmatprep.subr.bf16.mxu0 0
    %542 = vmatpush1.bf16.msra.mxu0 0
    %543 = vmatprep.subr.bf16.mxu0 0
    %544 = vmatpush1.bf16.msra.mxu0 0
    %545 = vmatprep.subr.bf16.mxu0 0
    %546 = vmatpush1.bf16.msra.mxu0 0
    %547 = vmatprep.subr.bf16.mxu0 0
    %548 = vmatpush1.bf16.msra.mxu0 0
    %549 = vmatprep.mubr.bf16.mxu0 0
    %550 = vmatmul.mubr.bf16.gmra.mrb[0].mxu0 %v446
    %v551 = vpop.f32.mrb[0].mxu0
    %v552 = vadd.f32 %v468, %v551
    %v553 = vpop.f32.mrb[0].mxu0
    %v554 = vpop.f32.mrb[0].mxu0
    %v555 = vadd.f32 %v468, %v554
    %v556 = vpop.f32.mrb[0].mxu0
    %557 = vdwg.mxu0
    %v558 = vmax.f32 %v552, 0.0
    %v559 = vmax.f32 %v555, 0.0
    %v560 = vpack.c.bf16 %v559, %v558
    %s561 = scalar_lea.vmem [#allocation2], 256
    %v562 = vld [vmem:[%s561] sm:$0xf]
    %v563 = vld [vmem:[%s561 + $0x4] sm:$0xf]
    %v564 = vld [vmem:[%s561 + $0x8] sm:$0xf]
    %v565 = vld [vmem:[%s561 + $0xc] sm:$0xf]
    %v566 = vld [vmem:[%s561 + $0x10] sm:$0xf]
    %v567 = vld [vmem:[%s561 + $0x14] sm:$0xf]
    %v568 = vld [vmem:[%s561 + $0x18] sm:$0xf]
    %v569 = vld [vmem:[%s561 + $0x1c] sm:$0xf]
    %v570 = vld [vmem:[%s561 + $0x20] sm:$0xf]
    %v571 = vld [vmem:[%s561 + $0x24] sm:$0xf]
    %v572 = vld [vmem:[%s561 + $0x28] sm:$0xf]
    %v573 = vld [vmem:[%s561 + $0x2c] sm:$0xf]
    %v574 = vld [vmem:[%s561 + $0x30] sm:$0xf]
    %v575 = vld [vmem:[%s561 + $0x34] sm:$0xf]
    %v576 = vld [vmem:[%s561 + $0x38] sm:$0xf]
    %v577 = vld [vmem:[%s561 + $0x3c] sm:$0xf]
    %v578 = vld [vmem:[%s3 + $0x5] sm:$0x1]
    %v579 = vlaneseq
    %v580 = vshrl.u32 %v579, 7
    %v581 = vsub.s32 0, %v580
    %v582 = vrot.slane %v578, %v581
    %v599 = vunpack.c.l.b16 %v562
    %v600 = vunpack.c.l.b16 %v563
    %v601 = vunpack.c.l.b16 %v564
    %v602 = vunpack.c.l.b16 %v565
    %v603 = vunpack.c.l.b16 %v566
    %v604 = vunpack.c.l.b16 %v567
    %v605 = vunpack.c.l.b16 %v568
    %v606 = vunpack.c.l.b16 %v569
    %v607 = vunpack.c.l.b16 %v570
    %v608 = vunpack.c.l.b16 %v571
    %v609 = vunpack.c.l.b16 %v572
    %v610 = vunpack.c.l.b16 %v573
    %v611 = vunpack.c.l.b16 %v574
    %v612 = vunpack.c.l.b16 %v575
    %v613 = vunpack.c.l.b16 %v576
    %v614 = vunpack.c.l.b16 %v577
    %v615 = vpack.c.b16 %v600, %v599
    %v616 = vpack.c.b16 %v602, %v601
    %v617 = vpack.c.b16 %v604, %v603
    %v618 = vpack.c.b16 %v606, %v605
    %v619 = vpack.c.b16 %v608, %v607
    %v620 = vpack.c.b16 %v610, %v609
    %v621 = vpack.c.b16 %v612, %v611
    %v622 = vpack.c.b16 %v614, %v613
    %631 = vmatprep.subr.bf16.mxu0 0
    %632 = vmatpush1.bf16.msra.mxu0 %v615
    %633 = vmatprep.subr.bf16.mxu0 0
    %634 = vmatpush1.bf16.msra.mxu0 %v616
    %635 = vmatprep.subr.bf16.mxu0 0
    %636 = vmatpush1.bf16.msra.mxu0 %v617
    %637 = vmatprep.subr.bf16.mxu0 0
    %638 = vmatpush1.bf16.msra.mxu0 %v618
    %639 = vmatprep.subr.bf16.mxu0 0
    %640 = vmatpush1.bf16.msra.mxu0 %v619
    %641 = vmatprep.subr.bf16.mxu0 0
    %642 = vmatpush1.bf16.msra.mxu0 %v620
    %643 = vmatprep.subr.bf16.mxu0 0
    %644 = vmatpush1.bf16.msra.mxu0 %v621
    %645 = vmatprep.subr.bf16.mxu0 0
    %646 = vmatpush1.bf16.msra.mxu0 %v622
    %647 = vmatprep.subr.bf16.mxu0 0
    %648 = vmatpush1.bf16.msra.mxu0 0
    %649 = vmatprep.subr.bf16.mxu0 0
    %650 = vmatpush1.bf16.msra.mxu0 0
    %651 = vmatprep.subr.bf16.mxu0 0
    %652 = vmatpush1.bf16.msra.mxu0 0
    %653 = vmatprep.subr.bf16.mxu0 0
    %654 = vmatpush1.bf16.msra.mxu0 0
    %655 = vmatprep.subr.bf16.mxu0 0
    %656 = vmatpush1.bf16.msra.mxu0 0
    %657 = vmatprep.subr.bf16.mxu0 0
    %658 = vmatpush1.bf16.msra.mxu0 0
    %659 = vmatprep.subr.bf16.mxu0 0
    %660 = vmatpush1.bf16.msra.mxu0 0
    %661 = vmatprep.subr.bf16.mxu0 0
    %662 = vmatpush1.bf16.msra.mxu0 0
    %663 = vmatprep.mubr.bf16.mxu0 0
    %664 = vmatmul.mubr.bf16.gmra.mrb[0].mxu0 %v560
    %v665 = vpop.f32.mrb[0].mxu0
    %v666 = vadd.f32 %v582, %v665
    %v667 = vpop.f32.mrb[0].mxu0
    %v668 = vpop.f32.mrb[0].mxu0
    %v669 = vadd.f32 %v582, %v668
    %v670 = vpop.f32.mrb[0].mxu0
    %671 = vdwg.mxu0
    %v672 = vpack.c.bf16 %v669, %v666
    %s673 = scalar_lea.vmem [#allocation2], 320
    %v674 = vld [vmem:[%s673] sm:$0xf]
    %v675 = vld [vmem:[%s673 + $0x4] sm:$0xf]
    %v676 = vld [vmem:[%s673 + $0x8] sm:$0xf]
    %v677 = vld [vmem:[%s673 + $0xc] sm:$0xf]
    %v678 = vld [vmem:[%s673 + $0x10] sm:$0xf]
    %v679 = vld [vmem:[%s673 + $0x14] sm:$0xf]
    %v680 = vld [vmem:[%s673 + $0x18] sm:$0xf]
    %v681 = vld [vmem:[%s673 + $0x1c] sm:$0xf]
    %v682 = vld [vmem:[%s673 + $0x20] sm:$0xf]
    %v683 = vld [vmem:[%s673 + $0x24] sm:$0xf]
    %v684 = vld [vmem:[%s673 + $0x28] sm:$0xf]
    %v685 = vld [vmem:[%s673 + $0x2c] sm:$0xf]
    %v686 = vld [vmem:[%s673 + $0x30] sm:$0xf]
    %v687 = vld [vmem:[%s673 + $0x34] sm:$0xf]
    %v688 = vld [vmem:[%s673 + $0x38] sm:$0xf]
    %v689 = vld [vmem:[%s673 + $0x3c] sm:$0xf]
    %s690 = scalar_lea.vmem [#allocation2], 384
    %v691 = vld [vmem:[%s690] sm:$0xf]
    %v692 = vld [vmem:[%s690 + $0x4] sm:$0xf]
    %v693 = vld [vmem:[%s690 + $0x8] sm:$0xf]
    %v694 = vld [vmem:[%s690 + $0xc] sm:$0xf]
    %v695 = vld [vmem:[%s690 + $0x10] sm:$0xf]
    %v696 = vld [vmem:[%s690 + $0x14] sm:$0xf]
    %v697 = vld [vmem:[%s690 + $0x18] sm:$0xf]
    %v698 = vld [vmem:[%s690 + $0x1c] sm:$0xf]
    %v699 = vld [vmem:[%s690 + $0x20] sm:$0xf]
    %v700 = vld [vmem:[%s690 + $0x24] sm:$0xf]
    %v701 = vld [vmem:[%s690 + $0x28] sm:$0xf]
    %v702 = vld [vmem:[%s690 + $0x2c] sm:$0xf]
    %v703 = vld [vmem:[%s690 + $0x30] sm:$0xf]
    %v704 = vld [vmem:[%s690 + $0x34] sm:$0xf]
    %v705 = vld [vmem:[%s690 + $0x38] sm:$0xf]
    %v706 = vld [vmem:[%s690 + $0x3c] sm:$0xf]
    %v723 = vunpack.c.l.b16 %v691
    %v724 = vunpack.c.l.b16 %v692
    %v725 = vunpack.c.l.b16 %v693
    %v726 = vunpack.c.l.b16 %v694
    %v727 = vunpack.c.l.b16 %v695
    %v728 = vunpack.c.l.b16 %v696
    %v729 = vunpack.c.l.b16 %v697
    %v730 = vunpack.c.l.b16 %v698
    %v731 = vunpack.c.l.b16 %v699
    %v732 = vunpack.c.l.b16 %v700
    %v733 = vunpack.c.l.b16 %v701
    %v734 = vunpack.c.l.b16 %v702
    %v735 = vunpack.c.l.b16 %v703
    %v736 = vunpack.c.l.b16 %v704
    %v737 = vunpack.c.l.b16 %v705
    %v738 = vunpack.c.l.b16 %v706
    %v739 = vpack.c.b16 %v724, %v723
    %v740 = vpack.c.b16 %v726, %v725
    %v741 = vpack.c.b16 %v728, %v727
    %v742 = vpack.c.b16 %v730, %v729
    %v743 = vpack.c.b16 %v732, %v731
    %v744 = vpack.c.b16 %v734, %v733
    %v745 = vpack.c.b16 %v736, %v735
    %v746 = vpack.c.b16 %v738, %v737
    %755 = vmatprep.subr.bf16.mxu0 0
    %756 = vmatpush1.bf16.msra.mxu0 %v739
    %757 = vmatprep.subr.bf16.mxu0 0
    %758 = vmatpush1.bf16.msra.mxu0 %v740
    %759 = vmatprep.subr.bf16.mxu0 0
    %760 = vmatpush1.bf16.msra.mxu0 %v741
    %761 = vmatprep.subr.bf16.mxu0 0
    %762 = vmatpush1.bf16.msra.mxu0 %v742
    %763 = vmatprep.subr.bf16.mxu0 0
    %764 = vmatpush1.bf16.msra.mxu0 %v743
    %765 = vmatprep.subr.bf16.mxu0 0
    %766 = vmatpush1.bf16.msra.mxu0 %v744
    %767 = vmatprep.subr.bf16.mxu0 0
    %768 = vmatpush1.bf16.msra.mxu0 %v745
    %769 = vmatprep.subr.bf16.mxu0 0
    %770 = vmatpush1.bf16.msra.mxu0 %v746
    %771 = vmatprep.subr.bf16.mxu0 0
    %772 = vmatpush1.bf16.msra.mxu0 0
    %773 = vmatprep.subr.bf16.mxu0 0
    %774 = vmatpush1.bf16.msra.mxu0 0
    %775 = vmatprep.subr.bf16.mxu0 0
    %776 = vmatpush1.bf16.msra.mxu0 0
    %777 = vmatprep.subr.bf16.mxu0 0
    %778 = vmatpush1.bf16.msra.mxu0 0
    %779 = vmatprep.subr.bf16.mxu0 0
    %780 = vmatpush1.bf16.msra.mxu0 0
    %781 = vmatprep.subr.bf16.mxu0 0
    %782 = vmatpush1.bf16.msra.mxu0 0
    %783 = vmatprep.subr.bf16.mxu0 0
    %784 = vmatpush1.bf16.msra.mxu0 0
    %785 = vmatprep.subr.bf16.mxu0 0
    %786 = vmatpush1.bf16.msra.mxu0 0
    %787 = vmatprep.mubr.bf16.mxu0 0
    %788 = vmatmul.mubr.bf16.gmra.mrb[0].mxu0 %v332
    %v789 = vpop.f32.mrb[0].mxu0
    %v790 = vadd.f32 0.0, %v789
    %v791 = vpop.f32.mrb[0].mxu0
    %v792 = vpop.f32.mrb[0].mxu0
    %v793 = vadd.f32 0.0, %v792
    %v794 = vpop.f32.mrb[0].mxu0
    %795 = vdwg.mxu0
    %v812 = vunpack.c.l.b16 %v674
    %v813 = vunpack.c.l.b16 %v675
    %v814 = vunpack.c.l.b16 %v676
    %v815 = vunpack.c.l.b16 %v677
    %v816 = vunpack.c.l.b16 %v678
    %v817 = vunpack.c.l.b16 %v679
    %v818 = vunpack.c.l.b16 %v680
    %v819 = vunpack.c.l.b16 %v681
    %v820 = vunpack.c.l.b16 %v682
    %v821 = vunpack.c.l.b16 %v683
    %v822 = vunpack.c.l.b16 %v684
    %v823 = vunpack.c.l.b16 %v685
    %v824 = vunpack.c.l.b16 %v686
    %v825 = vunpack.c.l.b16 %v687
    %v826 = vunpack.c.l.b16 %v688
    %v827 = vunpack.c.l.b16 %v689
    %v828 = vpack.c.b16 %v813, %v812
    %v829 = vpack.c.b16 %v815, %v814
    %v830 = vpack.c.b16 %v817, %v816
    %v831 = vpack.c.b16 %v819, %v818
    %v832 = vpack.c.b16 %v821, %v820
    %v833 = vpack.c.b16 %v823, %v822
    %v834 = vpack.c.b16 %v825, %v824
    %v835 = vpack.c.b16 %v827, %v826
    %844 = vmatprep.subr.bf16.mxu0 0
    %845 = vmatpush1.bf16.msra.mxu0 %v828
    %846 = vmatprep.subr.bf16.mxu0 0
    %847 = vmatpush1.bf16.msra.mxu0 %v829
    %848 = vmatprep.subr.bf16.mxu0 0
    %849 = vmatpush1.bf16.msra.mxu0 %v830
    %850 = vmatprep.subr.bf16.mxu0 0
    %851 = vmatpush1.bf16.msra.mxu0 %v831
    %852 = vmatprep.subr.bf16.mxu0 0
    %853 = vmatpush1.bf16.msra.mxu0 %v832
    %854 = vmatprep.subr.bf16.mxu0 0
    %855 = vmatpush1.bf16.msra.mxu0 %v833
    %856 = vmatprep.subr.bf16.mxu0 0
    %857 = vmatpush1.bf16.msra.mxu0 %v834
    %858 = vmatprep.subr.bf16.mxu0 0
    %859 = vmatpush1.bf16.msra.mxu0 %v835
    %860 = vmatprep.subr.bf16.mxu0 0
    %861 = vmatpush1.bf16.msra.mxu0 0
    %862 = vmatprep.subr.bf16.mxu0 0
    %863 = vmatpush1.bf16.msra.mxu0 0
    %864 = vmatprep.subr.bf16.mxu0 0
    %865 = vmatpush1.bf16.msra.mxu0 0
    %866 = vmatprep.subr.bf16.mxu0 0
    %867 = vmatpush1.bf16.msra.mxu0 0
    %868 = vmatprep.subr.bf16.mxu0 0
    %869 = vmatpush1.bf16.msra.mxu0 0
    %870 = vmatprep.subr.bf16.mxu0 0
    %871 = vmatpush1.bf16.msra.mxu0 0
    %872 = vmatprep.subr.bf16.mxu0 0
    %873 = vmatpush1.bf16.msra.mxu0 0
    %874 = vmatprep.subr.bf16.mxu0 0
    %875 = vmatpush1.bf16.msra.mxu0 0
    %876 = vmatprep.mubr.bf16.mxu0 0
    %877 = vmatmul.mubr.bf16.gmra.mrb[0].mxu0 %v672
    %v878 = vpop.f32.mrb[0].mxu0
    %v879 = vadd.f32 %v790, %v878
    %v880 = vpop.f32.mrb[0].mxu0
    %v881 = vpop.f32.mrb[0].mxu0
    %v882 = vadd.f32 %v793, %v881
    %v883 = vpop.f32.mrb[0].mxu0
    %884 = vdwg.mxu0
    %v885 = vld [vmem:[%s3 + $0x6] sm:$0x1]
    %v886 = vlaneseq
    %v887 = vshrl.u32 %v886, 7
    %v888 = vsub.s32 0, %v887
    %v889 = vrot.slane %v885, %v888
    %v890 = vadd.f32 %v879, %v889
    %v891 = vadd.f32 %v882, %v889
    %v892 = vmax.f32 %v890, 0.0
    %v893 = vmax.f32 %v891, 0.0
    %v894 = vpack.c.bf16 %v893, %v892
    %s895 = scalar_lea.vmem [#allocation2], 448
    %v896 = vld [vmem:[%s895] sm:$0xf]
    %v897 = vld [vmem:[%s895 + $0x4] sm:$0xf]
    %v898 = vld [vmem:[%s895 + $0x8] sm:$0xf]
    %v899 = vld [vmem:[%s895 + $0xc] sm:$0xf]
    %v900 = vld [vmem:[%s895 + $0x10] sm:$0xf]
    %v901 = vld [vmem:[%s895 + $0x14] sm:$0xf]
    %v902 = vld [vmem:[%s895 + $0x18] sm:$0xf]
    %v903 = vld [vmem:[%s895 + $0x1c] sm:$0xf]
    %v904 = vld [vmem:[%s895 + $0x20] sm:$0xf]
    %v905 = vld [vmem:[%s895 + $0x24] sm:$0xf]
    %v906 = vld [vmem:[%s895 + $0x28] sm:$0xf]
    %v907 = vld [vmem:[%s895 + $0x2c] sm:$0xf]
    %v908 = vld [vmem:[%s895 + $0x30] sm:$0xf]
    %v909 = vld [vmem:[%s895 + $0x34] sm:$0xf]
    %v910 = vld [vmem:[%s895 + $0x38] sm:$0xf]
    %v911 = vld [vmem:[%s895 + $0x3c] sm:$0xf]
    %v912 = vld [vmem:[%s3 + $0x7] sm:$0x1]
    %v913 = vlaneseq
    %v914 = vshrl.u32 %v913, 7
    %v915 = vsub.s32 0, %v914
    %v916 = vrot.slane %v912, %v915
    %v933 = vunpack.c.l.b16 %v896
    %v934 = vunpack.c.l.b16 %v897
    %v935 = vunpack.c.l.b16 %v898
    %v936 = vunpack.c.l.b16 %v899
    %v937 = vunpack.c.l.b16 %v900
    %v938 = vunpack.c.l.b16 %v901
    %v939 = vunpack.c.l.b16 %v902
    %v940 = vunpack.c.l.b16 %v903
    %v941 = vunpack.c.l.b16 %v904
    %v942 = vunpack.c.l.b16 %v905
    %v943 = vunpack.c.l.b16 %v906
    %v944 = vunpack.c.l.b16 %v907
    %v945 = vunpack.c.l.b16 %v908
    %v946 = vunpack.c.l.b16 %v909
    %v947 = vunpack.c.l.b16 %v910
    %v948 = vunpack.c.l.b16 %v911
    %v949 = vpack.c.b16 %v934, %v933
    %v950 = vpack.c.b16 %v936, %v935
    %v951 = vpack.c.b16 %v938, %v937
    %v952 = vpack.c.b16 %v940, %v939
    %v953 = vpack.c.b16 %v942, %v941
    %v954 = vpack.c.b16 %v944, %v943
    %v955 = vpack.c.b16 %v946, %v945
    %v956 = vpack.c.b16 %v948, %v947
    %965 = vmatprep.subr.bf16.mxu0 0
    %966 = vmatpush1.bf16.msra.mxu0 %v949
    %967 = vmatprep.subr.bf16.mxu0 0
    %968 = vmatpush1.bf16.msra.mxu0 %v950
    %969 = vmatprep.subr.bf16.mxu0 0
    %970 = vmatpush1.bf16.msra.mxu0 %v951
    %971 = vmatprep.subr.bf16.mxu0 0
    %972 = vmatpush1.bf16.msra.mxu0 %v952
    %973 = vmatprep.subr.bf16.mxu0 0
    %974 = vmatpush1.bf16.msra.mxu0 %v953
    %975 = vmatprep.subr.bf16.mxu0 0
    %976 = vmatpush1.bf16.msra.mxu0 %v954
    %977 = vmatprep.subr.bf16.mxu0 0
    %978 = vmatpush1.bf16.msra.mxu0 %v955
    %979 = vmatprep.subr.bf16.mxu0 0
    %980 = vmatpush1.bf16.msra.mxu0 %v956
    %981 = vmatprep.subr.bf16.mxu0 0
    %982 = vmatpush1.bf16.msra.mxu0 0
    %983 = vmatprep.subr.bf16.mxu0 0
    %984 = vmatpush1.bf16.msra.mxu0 0
    %985 = vmatprep.subr.bf16.mxu0 0
    %986 = vmatpush1.bf16.msra.mxu0 0
    %987 = vmatprep.subr.bf16.mxu0 0
    %988 = vmatpush1.bf16.msra.mxu0 0
    %989 = vmatprep.subr.bf16.mxu0 0
    %990 = vmatpush1.bf16.msra.mxu0 0
    %991 = vmatprep.subr.bf16.mxu0 0
    %992 = vmatpush1.bf16.msra.mxu0 0
    %993 = vmatprep.subr.bf16.mxu0 0
    %994 = vmatpush1.bf16.msra.mxu0 0
    %995 = vmatprep.subr.bf16.mxu0 0
    %996 = vmatpush1.bf16.msra.mxu0 0
    %997 = vmatprep.mubr.bf16.mxu0 0
    %998 = vmatmul.mubr.bf16.gmra.mrb[0].mxu0 %v894
    %v999 = vpop.f32.mrb[0].mxu0
    %v1000 = vadd.f32 %v916, %v999
    %v1001 = vpop.f32.mrb[0].mxu0
    %v1002 = vpop.f32.mrb[0].mxu0
    %v1003 = vadd.f32 %v916, %v1002
    %v1004 = vpop.f32.mrb[0].mxu0
    %1005 = vdwg.mxu0
    %v1006 = vmax.f32 %v1000, 0.0
    %v1007 = vmax.f32 %v1003, 0.0
    %v1008 = vpack.c.bf16 %v1007, %v1006
    %s1009 = scalar_lea.vmem [#allocation2], 512
    %v1010 = vld [vmem:[%s1009] sm:$0xf]
    %v1011 = vld [vmem:[%s1009 + $0x4] sm:$0xf]
    %v1012 = vld [vmem:[%s1009 + $0x8] sm:$0xf]
    %v1013 = vld [vmem:[%s1009 + $0xc] sm:$0xf]
    %v1014 = vld [vmem:[%s1009 + $0x10] sm:$0xf]
    %v1015 = vld [vmem:[%s1009 + $0x14] sm:$0xf]
    %v1016 = vld [vmem:[%s1009 + $0x18] sm:$0xf]
    %v1017 = vld [vmem:[%s1009 + $0x1c] sm:$0xf]
    %v1018 = vld [vmem:[%s1009 + $0x20] sm:$0xf]
    %v1019 = vld [vmem:[%s1009 + $0x24] sm:$0xf]
    %v1020 = vld [vmem:[%s1009 + $0x28] sm:$0xf]
    %v1021 = vld [vmem:[%s1009 + $0x2c] sm:$0xf]
    %v1022 = vld [vmem:[%s1009 + $0x30] sm:$0xf]
    %v1023 = vld [vmem:[%s1009 + $0x34] sm:$0xf]
    %v1024 = vld [vmem:[%s1009 + $0x38] sm:$0xf]
    %v1025 = vld [vmem:[%s1009 + $0x3c] sm:$0xf]
    %v1026 = vld [vmem:[%s3 + $0x8] sm:$0x1]
    %v1027 = vlaneseq
    %v1028 = vshrl.u32 %v1027, 7
    %v1029 = vsub.s32 0, %v1028
    %v1030 = vrot.slane %v1026, %v1029
    %v1047 = vunpack.c.l.b16 %v1010
    %v1048 = vunpack.c.l.b16 %v1011
    %v1049 = vunpack.c.l.b16 %v1012
    %v1050 = vunpack.c.l.b16 %v1013
    %v1051 = vunpack.c.l.b16 %v1014
    %v1052 = vunpack.c.l.b16 %v1015
    %v1053 = vunpack.c.l.b16 %v1016
    %v1054 = vunpack.c.l.b16 %v1017
    %v1055 = vunpack.c.l.b16 %v1018
    %v1056 = vunpack.c.l.b16 %v1019
    %v1057 = vunpack.c.l.b16 %v1020
    %v1058 = vunpack.c.l.b16 %v1021
    %v1059 = vunpack.c.l.b16 %v1022
    %v1060 = vunpack.c.l.b16 %v1023
    %v1061 = vunpack.c.l.b16 %v1024
    %v1062 = vunpack.c.l.b16 %v1025
    %v1063 = vpack.c.b16 %v1048, %v1047
    %v1064 = vpack.c.b16 %v1050, %v1049
    %v1065 = vpack.c.b16 %v1052, %v1051
    %v1066 = vpack.c.b16 %v1054, %v1053
    %v1067 = vpack.c.b16 %v1056, %v1055
    %v1068 = vpack.c.b16 %v1058, %v1057
    %v1069 = vpack.c.b16 %v1060, %v1059
    %v1070 = vpack.c.b16 %v1062, %v1061
    %1079 = vmatprep.subr.bf16.mxu0 0
    %1080 = vmatpush1.bf16.msra.mxu0 %v1063
    %1081 = vmatprep.subr.bf16.mxu0 0
    %1082 = vmatpush1.bf16.msra.mxu0 %v1064
    %1083 = vmatprep.subr.bf16.mxu0 0
    %1084 = vmatpush1.bf16.msra.mxu0 %v1065
    %1085 = vmatprep.subr.bf16.mxu0 0
    %1086 = vmatpush1.bf16.msra.mxu0 %v1066
    %1087 = vmatprep.subr.bf16.mxu0 0
    %1088 = vmatpush1.bf16.msra.mxu0 %v1067
    %1089 = vmatprep.subr.bf16.mxu0 0
    %1090 = vmatpush1.bf16.msra.mxu0 %v1068
    %1091 = vmatprep.subr.bf16.mxu0 0
    %1092 = vmatpush1.bf16.msra.mxu0 %v1069
    %1093 = vmatprep.subr.bf16.mxu0 0
    %1094 = vmatpush1.bf16.msra.mxu0 %v1070
    %1095 = vmatprep.subr.bf16.mxu0 0
    %1096 = vmatpush1.bf16.msra.mxu0 0
    %1097 = vmatprep.subr.bf16.mxu0 0
    %1098 = vmatpush1.bf16.msra.mxu0 0
    %1099 = vmatprep.subr.bf16.mxu0 0
    %1100 = vmatpush1.bf16.msra.mxu0 0
    %1101 = vmatprep.subr.bf16.mxu0 0
    %1102 = vmatpush1.bf16.msra.mxu0 0
    %1103 = vmatprep.subr.bf16.mxu0 0
    %1104 = vmatpush1.bf16.msra.mxu0 0
    %1105 = vmatprep.subr.bf16.mxu0 0
    %1106 = vmatpush1.bf16.msra.mxu0 0
    %1107 = vmatprep.subr.bf16.mxu0 0
    %1108 = vmatpush1.bf16.msra.mxu0 0
    %1109 = vmatprep.subr.bf16.mxu0 0
    %1110 = vmatpush1.bf16.msra.mxu0 0
    %1111 = vmatprep.mubr.bf16.mxu0 0
    %1112 = vmatmul.mubr.bf16.gmra.mrb[0].mxu0 %v1008
    %v1113 = vpop.f32.mrb[0].mxu0
    %v1114 = vadd.f32 %v1030, %v1113
    %v1115 = vpop.f32.mrb[0].mxu0
    %v1116 = vpop.f32.mrb[0].mxu0
    %v1117 = vadd.f32 %v1030, %v1116
    %v1118 = vpop.f32.mrb[0].mxu0
    %1119 = vdwg.mxu0
    %v1120 = vadd.f32 %v1114, %v666
    %v1121 = vadd.f32 %v1117, %v669
    %1122 = vst [vmem:[%s4] sm:$0xff] %v1120
    %1123 = vst [vmem:[%s4 + $0x8] sm:$0xff] %v1121
    // Predicated region
    $region22: #{autoencoder_forward.1} parent=1 // pred_check
      _
    $region23: #{autoencoder_forward.1} parent=1 // pred_check_branch
      %1125 = sbr.rel (0) target = $region25
    $region24: #{autoencoder_forward.1} parent=1 // pred_region
      _
    $region25: #{autoencoder_forward.1} parent=1 // pred_fallthru
      _
    // Predicated region
    $region26: #{autoencoder_forward.1} parent=1 // pred_check
      _
    $region27: #{autoencoder_forward.1} parent=1 // pred_check_branch
      %1127 = sbr.rel (0) target = $region29
    $region28: #{autoencoder_forward.1} parent=1 // pred_region
      _
    $region29: #{autoencoder_forward.1} parent=1 // pred_fallthru
      _
    %1128 = vsyncpa [#allocation3], 1

</llo_original>
